<compile_context>
chip_gen: v7x
topology: tpu7x:2x2x1
jax: 0.10.0
libtpu: 0.0.40
codegen_flags: <defaults>
</compile_context>

<pallas_src>
import jax
import jax.numpy as jnp
from jax.experimental import pallas as pl
from jax.experimental.pallas import tpu as pltpu


# ---------------------------------------------------------------------------
# Tiling helpers
# ---------------------------------------------------------------------------
def _sublane_tile(dtype):
    """Native sublane tile for the element type (8 f32, 16 bf16, 32 int8)."""
    itemsize = jnp.dtype(dtype).itemsize
    if itemsize >= 4:
        return 8
    return 8 * (4 // itemsize)


def _vmem_budget():
    """(per-block byte budget, vmem_limit_bytes), generation aware."""
    try:
        vmem_capacity = pltpu.get_tpu_info().vmem_capacity_bytes
    except Exception:
        vmem_capacity = 64 * 1024 * 1024  # be conservative (v7x-like)
    if vmem_capacity >= 100 * 1024 * 1024:
        # v5e / v6e (128 MiB VMEM).  v5e's default scoped limit is 16 MiB,
        # so raise it explicitly.
        return 6 * 1024 * 1024, 64 * 1024 * 1024
    # v7x (64 MiB VMEM per TensorCore): keep blocks small.
    return 2 * 1024 * 1024, 32 * 1024 * 1024


def _choose_tiles(n, hw, dtype, block_budget):
    """Tiles for the lane-dense fast path (requires hw % 128 == 0).

    One block is the (tb, thw) slab of a single channel.  Total VMEM is about
    8x tb*thw*itemsize (double-buffered input + three resident double-buffered
    outputs), which the budget accounts for.
    """
    itemsize = jnp.dtype(dtype).itemsize
    sub = _sublane_tile(dtype)
    hw128 = hw // 128

    tb_min = n if n < sub else sub

    # Largest multiple-of-128 divisor of hw that fits the budget at tb_min rows.
    d = max(1, min(hw128, block_budget // max(1, 128 * tb_min * itemsize)))
    while hw128 % d:
        d -= 1
    thw = 128 * d

    # Grow the batch tile (multiple of the packed sublane tile) to fill budget.
    if n < sub:
        tb = n
    else:
        tb = (block_budget // (thw * itemsize)) // sub * sub
        tb = int(min(max(sub, tb), (n // sub) * sub))

    # Guarantee >= 2 steps on the parallel (i, j) axes when there is enough
    # data, so both v7x TensorCores get work and the DMA pipeline overlaps.
    total_bytes = 3 * n * hw * itemsize
    if total_bytes >= (1 << 20) and pl.cdiv(n, tb) * (hw // thw) < 2:
        if n >= 2 * sub:
            tb = max(sub, ((n // 2) // sub) * sub)
        else:
            d2 = max(1, d // 2)
            while hw128 % d2:
                d2 -= 1
            thw = 128 * d2
    return tb, thw


# ---------------------------------------------------------------------------
# Fast path: lane-dense channel slices on a (N, 3*HW) view, hw % 128 == 0.
# ---------------------------------------------------------------------------
def _split_lane_kernel(x_ref, s0_ref, s1_ref, s2_ref):
    # x_ref: lane-dense (tb, thw) slab of channel `c`, hw-tile `j`, batch-tile
    # `i`.  Exactly one output is written per grid step; each output block
    # stays resident across the innermost channel axis (its index_map ignores
    # c), so it is written exactly once before being DMA'd back.
    c = pl.program_id(2)

    @pl.when(c == 0)
    def _():
        s0_ref[...] = x_ref[...]

    @pl.when(c == 1)
    def _():
        s1_ref[...] = x_ref[...]

    @pl.when(c == 2)
    def _():
        s2_ref[...] = x_ref[...]


def _split_fast(v1_fused, n, hw, tb, thw, vmem_limit):
    nj = hw // thw
    grid = (pl.cdiv(n, tb), nj, 3)  # channel innermost -> resident outputs
    in_spec = pl.BlockSpec((tb, thw), lambda i, j, c: (i, c * nj + j))
    out_spec = pl.BlockSpec((tb, thw), lambda i, j, c: (i, j))
    out_shape = tuple(
        jax.ShapeDtypeStruct((n, hw), v1_fused.dtype) for _ in range(3)
    )
    return pl.pallas_call(
        _split_lane_kernel,
        out_shape=out_shape,
        grid=grid,
        in_specs=[in_spec],
        out_specs=(out_spec, out_spec, out_spec),
        compiler_params=pltpu.CompilerParams(
            dimension_semantics=("parallel", "parallel", "arbitrary"),
            vmem_limit_bytes=vmem_limit,
        ),
    )(v1_fused)


# ---------------------------------------------------------------------------
# Fallback path: hw not a multiple of 128 -> full (3, hw) trailing block.
# (Correct but pays the 3->8 sublane padding + sublane gather.)
# ---------------------------------------------------------------------------
def _split_sublane_kernel(x_ref, s0_ref, s1_ref, s2_ref):
    s0_ref[...] = x_ref[:, 0, :]
    s1_ref[...] = x_ref[:, 1, :]
    s2_ref[...] = x_ref[:, 2, :]


def _split_fallback(v1_3d, n, hw, block_budget, vmem_limit):
    itemsize = jnp.dtype(v1_3d.dtype).itemsize
    sub = _sublane_tile(v1_3d.dtype)
    if n < sub:
        tb = n
    else:
        tb = (block_budget // (3 * hw * itemsize)) // sub * sub
        tb = int(min(max(sub, tb), (n // sub) * sub))
        if tb >= n and n >= 2 * sub:
            tb = max(sub, ((n // 2) // sub) * sub)
    grid = (pl.cdiv(n, tb),)
    in_spec = pl.BlockSpec((tb, 3, hw), lambda i: (i, 0, 0))
    out_spec = pl.BlockSpec((tb, hw), lambda i: (i, 0))
    out_shape = tuple(
        jax.ShapeDtypeStruct((n, hw), v1_3d.dtype) for _ in range(3)
    )
    return pl.pallas_call(
        _split_sublane_kernel,
        out_shape=out_shape,
        grid=grid,
        in_specs=[in_spec],
        out_specs=(out_spec, out_spec, out_spec),
        compiler_params=pltpu.CompilerParams(
            dimension_semantics=("parallel",),
            vmem_limit_bytes=vmem_limit,
        ),
    )(v1_3d)


# ---------------------------------------------------------------------------
# Forward
# ---------------------------------------------------------------------------
def model_forward(v1):
    """Pallas implementation of Model.forward.

    Args:
      v1: (N, 3, H, W) array (NCHW, like PyTorch).
    Returns:
      (concatenated_tensor, (split0, split1, split2))
    """
    n, c, h, w = v1.shape
    assert c == 3, "Model splits dim=1 into [1, 1, 1]; need 3 channels."
    hw = h * w
    block_budget, vmem_limit = _vmem_budget()

    if hw % 128 == 0:
        tb, thw = _choose_tiles(n, hw, v1.dtype, block_budget)
        # Free, contiguous reshape: channels become 128-aligned lane ranges.
        s0, s1, s2 = _split_fast(v1.reshape(n, 3 * hw), n, hw, tb, thw, vmem_limit)
    else:
        s0, s1, s2 = _split_fallback(v1.reshape(n, 3, hw), n, hw, block_budget, vmem_limit)

    # Cosmetic, contiguous reshapes back to the PyTorch split shapes.
    splits = tuple(s.reshape(n, 1, h, w) for s in (s0, s1, s2))

    # cat(split(x, [1,1,1], dim=1), dim=1) == x : identity, no extra copy.
    concatenated = v1
    return concatenated, splits


if __name__ == "__main__":
    key = jax.random.PRNGKey(0)
    # Small NCHW input consistent with the module: batch=2, channels=3, 16x16.
    v1 = jax.random.normal(key, (2, 3, 16, 16), dtype=jnp.float32)

    cat, splits = model_forward(v1)
    jax.block_until_ready(cat)
    for s in splits:
        jax.block_until_ready(s)

    # Sanity checks against the reference semantics.
    assert cat.shape == v1.shape
    assert jnp.allclose(cat, v1)
    for i, s in enumerate(splits):
        assert s.shape == (2, 1, 16, 16)
        assert jnp.allclose(s, v1[:, i:i + 1, :, :])

    print("KERNEL_OK")
</pallas_src>

<mosaic_0001>
module attributes {stable_mosaic.version = 11 : i64} {
  func.func @_split_lane_kernel(%arg0: i32, %arg1: i32, %arg2: i32, %arg3: memref<2x256xf32, #tpu.memory_space<vmem>>, %arg4: memref<2x256xf32, #tpu.memory_space<vmem>>, %arg5: memref<2x256xf32, #tpu.memory_space<vmem>>, %arg6: memref<2x256xf32, #tpu.memory_space<vmem>>) attributes {dimension_semantics = [#tpu.dimension_semantics<parallel>, #tpu.dimension_semantics<parallel>, #tpu.dimension_semantics<arbitrary>], iteration_bounds = array<i64: 1, 1, 3>, scalar_prefetch = 0 : i64, scratch_operands = 0 : i64, tpu.core_type = #tpu.core_type<tc>, window_params = [{transform_indices = @transform_0, window_bounds = array<i64: 2, 256>}, {transform_indices = @transform_1, window_bounds = array<i64: 2, 256>}, {transform_indices = @transform_2, window_bounds = array<i64: 2, 256>}, {transform_indices = @transform_3, window_bounds = array<i64: 2, 256>}]} {
    %c0_i32 = arith.constant 0 : i32
    %0 = arith.cmpi eq, %arg2, %c0_i32 : i32
    %1 = arith.extui %0 : i1 to i32
    %c0_i32_0 = arith.constant 0 : i32
    %2 = arith.cmpi ne, %1, %c0_i32_0 : i32
    scf.if %2 {
      %c0 = arith.constant 0 : index
      %c0_3 = arith.constant 0 : index
      %9 = vector.load %arg3[%c0, %c0_3] : memref<2x256xf32, #tpu.memory_space<vmem>>, vector<2x256xf32>
      %c0_4 = arith.constant 0 : index
      %c0_5 = arith.constant 0 : index
      %10 = vector.load %arg4[%c0_4, %c0_5] : memref<2x256xf32, #tpu.memory_space<vmem>>, vector<2x256xf32>
      tpu.vector_store %arg4[%c0_4, %c0_5], %9 {strides = array<i32>} : memref<2x256xf32, #tpu.memory_space<vmem>>, vector<2x256xf32>,
    } else {
    }
    %c1_i32 = arith.constant 1 : i32
    %3 = arith.cmpi eq, %arg2, %c1_i32 : i32
    %4 = arith.extui %3 : i1 to i32
    %c0_i32_1 = arith.constant 0 : i32
    %5 = arith.cmpi ne, %4, %c0_i32_1 : i32
    scf.if %5 {
      %c0 = arith.constant 0 : index
      %c0_3 = arith.constant 0 : index
      %9 = vector.load %arg3[%c0, %c0_3] : memref<2x256xf32, #tpu.memory_space<vmem>>, vector<2x256xf32>
      %c0_4 = arith.constant 0 : index
      %c0_5 = arith.constant 0 : index
      %10 = vector.load %arg5[%c0_4, %c0_5] : memref<2x256xf32, #tpu.memory_space<vmem>>, vector<2x256xf32>
      tpu.vector_store %arg5[%c0_4, %c0_5], %9 {strides = array<i32>} : memref<2x256xf32, #tpu.memory_space<vmem>>, vector<2x256xf32>,
    } else {
    }
    %c2_i32 = arith.constant 2 : i32
    %6 = arith.cmpi eq, %arg2, %c2_i32 : i32
    %7 = arith.extui %6 : i1 to i32
    %c0_i32_2 = arith.constant 0 : i32
    %8 = arith.cmpi ne, %7, %c0_i32_2 : i32
    scf.if %8 {
      %c0 = arith.constant 0 : index
      %c0_3 = arith.constant 0 : index
      %9 = vector.load %arg3[%c0, %c0_3] : memref<2x256xf32, #tpu.memory_space<vmem>>, vector<2x256xf32>
      %c0_4 = arith.constant 0 : index
      %c0_5 = arith.constant 0 : index
      %10 = vector.load %arg6[%c0_4, %c0_5] : memref<2x256xf32, #tpu.memory_space<vmem>>, vector<2x256xf32>
      tpu.vector_store %arg6[%c0_4, %c0_5], %9 {strides = array<i32>} : memref<2x256xf32, #tpu.memory_space<vmem>>, vector<2x256xf32>,
    } else {
    }
    return
  }
  func.func @transform_0(%arg0: i32, %arg1: i32, %arg2: i32) -> (i32, i32) {
    %c1_i32 = arith.constant 1 : i32
    %0 = arith.muli %arg2, %c1_i32 : i32
    %1 = arith.addi %0, %arg1 : i32
    %c0_i32 = arith.constant 0 : i32
    return %arg0, %1 : i32, i32
  }
  func.func @transform_1(%arg0: i32, %arg1: i32, %arg2: i32) -> (i32, i32) {
    %c0_i32 = arith.constant 0 : i32
    return %arg0, %arg1 : i32, i32
  }
  func.func @transform_2(%arg0: i32, %arg1: i32, %arg2: i32) -> (i32, i32) {
    %c0_i32 = arith.constant 0 : i32
    return %arg0, %arg1 : i32, i32
  }
  func.func @transform_3(%arg0: i32, %arg1: i32, %arg2: i32) -> (i32, i32) {
    %c0_i32 = arith.constant 0 : i32
    return %arg0, %arg1 : i32, i32
  }
}

</mosaic_0001>

<llo_original>
// kernel: tpu_custom_call.1
$region0: #{tpu_custom_call.1}
  #allocation0 [shape = 'u32[]', space=smem, size = 0x4, offset = 0x4, fixed_abs, tag = 'smem constant byte address 0x4 - core index']
  #allocation1 [shape = 'u32[144,128]{1,0:T(1,128)}', space=vmem, size = 0x12000, scoped, tag = 'internal scratch']
  %s0 = inlined_call_operand.hbm [shape: f32[2,768], index: 0, kind: input, shape index: {}]
  %s1 = inlined_call_operand.hbm [shape: f32[2,256], index: 1, kind: output, shape index: {0}]
  %s2 = inlined_call_operand.hbm [shape: f32[2,256], index: 2, kind: output, shape index: {1}]
  %s3 = inlined_call_operand.hbm [shape: f32[2,256], index: 3, kind: output, shape index: {2}]
  %4 = xla_tuple %s1, %s2, %s3
  %s5 = sld [smem:[#allocation0]]
  $region69: #{tpu_custom_call.1} parent=0
    _
  %s7 = ssub.s32 1, %s5
  %s8 = scalar_select 0, %s7, %s5
  $region1: #{tpu_custom_call.1} parent=0
    #allocation2 [shape = 'u8[4096]{0}', space=vmem, size = 0x1000, scoped, tag = 'input window, operand 0']
    #allocation3 [shape = 's32[2]{0}', space=sflag, size = 0x8, scoped, tag = 'scoped memory for tpu_custom_call.1']
    #allocation4 [shape = 's32[2]{0}', space=sflag, size = 0x8, scoped, tag = 'scoped memory for tpu_custom_call.1']
    #allocation5 [shape = 'u8[2048]{0}', space=vmem, size = 0x800, scoped, tag = 'output window, operand 0, single buffered']
    #allocation6 [shape = 'u8[2048]{0}', space=vmem, size = 0x800, scoped, tag = 'output window, operand 1, single buffered']
    #allocation7 [shape = 's32[1]{0}', space=sflag, size = 0x4, scoped, tag = 'scoped memory for tpu_custom_call.1']
    #allocation8 [shape = 'u8[2048]{0}', space=vmem, size = 0x800, scoped, tag = 'output window, operand 2, single buffered']
    %9 = vsyncpa [#allocation3], 0
    %s10 = scalar_lea.sflag [#allocation3], 1
    %11 = vsyncpa %s10, 0
    %12 = vsyncpa [#allocation4], 0
    %13 = vsyncpa [#allocation7], 0
    loop: start=0, step=1, limit=5
    $region2: #{tpu_custom_call.1} parent=1 // loop_pre_header
      _
    $region3: #{tpu_custom_call.1} parent=1 // loop_header
      %s15 = sphi 0, %s19
      %p16 = scmp.ge.s32.totalorder %s15, 5
      %s22 = sphi 0, %s41
      %s23 = sphi 0, %s37
      %s24 = sphi 0, %s33
      %s25 = sphi 0, %s22
      %s26 = sphi 0, %s23
      %s27 = sphi 0, %s24
      %s28 = sphi 0, %s25
      %s29 = sphi 0, %s26
      %s30 = sphi 0, %s27
      %s48 = sphi 0, %s50
      %s51 = sphi 0, %s48
      %s52 = sphi 0, %s51
      %s68 = sphi 0, %s52
      %s76 = sphi 0, %s78
      %s79 = sphi 0, %s76
      %s80 = sphi 0, %s79
      %s96 = sphi 0, %s80
      %s104 = sphi 0, %s106
      %s107 = sphi 0, %s104
      %s108 = sphi 0, %s107
      %s124 = sphi 0, %s108
      %s132 = sphi 0, %s134
      %s135 = sphi 0, %s132
      %s136 = sphi 0, %s135
      %s152 = sphi 0, %s136
    $region4: #{tpu_custom_call.1} parent=1 // loop_header_branch
      %18 = sbr.rel (%p16) target = $region8
    $region5: #{tpu_custom_call.1} parent=1 // loop_body
      %s20 = ssub.s32 %s15, 1
      %s21 = ssub.s32 %s15, 2
      %s31 = sadd.s32 1, %s24
      %p32 = scmp.ge.s32.totalorder %s31, 3
      %s33 = scalar_select %p32, 0, %s31
      %s34 = sadd.s32 1, %s23
      %s35 = scalar_select %p32, %s34, %s23
      %p36 = scmp.ge.s32.totalorder %s35, 1
      %s37 = scalar_select %p36, 0, %s35
      %s38 = sadd.s32 1, %s22
      %s39 = scalar_select %p36, %s38, %s22
      %p40 = scmp.ge.s32.totalorder %s39, 1
      %s41 = scalar_select %p40, 0, %s39
      %s42 = sadd.s32 %s24, %s23
      %s43 = sadd.s32 %s33, %s37
      %s44 = ssub.s32 %s22, %s41
      %s45 = ssub.s32 %s42, %s43
      %s46 = sor.u32 %s44, %s45
      %p47 = scmp.eq.s32.totalorder %s46, 0
      %s49 = sadd.s32 %s48, 1
      %s50 = scalar_select %p47, %s48, %s49
      %p53 = pneg %p47
      %p54 = scmp.eq.s32.totalorder %s15, 2
      %p55 = por %p53, %p54
      %p56 = scmp.ne.s32.totalorder %s48, %s51
      %p57 = scmp.eq.s32.totalorder %s15, 0
      %p58 = por %p56, %p57
      %p59 = scmp.ne.s32.totalorder %s48, %s51
      %p60 = scmp.eq.s32.totalorder %s20, 2
      %p61 = por %p59, %p60
      %p62 = scmp.ne.s32.totalorder %s51, %s52
      %p63 = scmp.eq.s32.totalorder %s20, 0
      %p64 = por %p62, %p63
      %p65 = scmp.ne.s32.totalorder %s51, %s52
      %p66 = scmp.eq.s32.totalorder %s21, 2
      %p67 = por %p65, %p66
      %p69 = scmp.ne.s32.totalorder %s52, %s68
      %p70 = scmp.eq.s32.totalorder %s21, 0
      %p71 = por %p69, %p70
      %s72 = ssub.s32 %s22, %s41
      %s73 = ssub.s32 %s23, %s37
      %s74 = sor.u32 %s72, %s73
      %p75 = scmp.eq.s32.totalorder %s74, 0
      %s77 = sadd.s32 %s76, 1
      %s78 = scalar_select %p75, %s76, %s77
      %p81 = pneg %p75
      %p82 = scmp.eq.s32.totalorder %s15, 2
      %p83 = por %p81, %p82
      %p84 = scmp.ne.s32.totalorder %s76, %s79
      %p85 = scmp.eq.s32.totalorder %s15, 0
      %p86 = por %p84, %p85
      %p87 = scmp.ne.s32.totalorder %s76, %s79
      %p88 = scmp.eq.s32.totalorder %s20, 2
      %p89 = por %p87, %p88
      %p90 = scmp.ne.s32.totalorder %s79, %s80
      %p91 = scmp.eq.s32.totalorder %s20, 0
      %p92 = por %p90, %p91
      %p93 = scmp.ne.s32.totalorder %s79, %s80
      %p94 = scmp.eq.s32.totalorder %s21, 2
      %p95 = por %p93, %p94
      %p97 = scmp.ne.s32.totalorder %s80, %s96
      %p98 = scmp.eq.s32.totalorder %s21, 0
      %p99 = por %p97, %p98
      %s100 = ssub.s32 %s22, %s41
      %s101 = ssub.s32 %s23, %s37
      %s102 = sor.u32 %s100, %s101
      %p103 = scmp.eq.s32.totalorder %s102, 0
      %s105 = sadd.s32 %s104, 1
      %s106 = scalar_select %p103, %s104, %s105
      %p109 = pneg %p103
      %p110 = scmp.eq.s32.totalorder %s15, 2
      %p111 = por %p109, %p110
      %p112 = scmp.ne.s32.totalorder %s104, %s107
      %p113 = scmp.eq.s32.totalorder %s15, 0
      %p114 = por %p112, %p113
      %p115 = scmp.ne.s32.totalorder %s104, %s107
      %p116 = scmp.eq.s32.totalorder %s20, 2
      %p117 = por %p115, %p116
      %p118 = scmp.ne.s32.totalorder %s107, %s108
      %p119 = scmp.eq.s32.totalorder %s20, 0
      %p120 = por %p118, %p119
      %p121 = scmp.ne.s32.totalorder %s107, %s108
      %p122 = scmp.eq.s32.totalorder %s21, 2
      %p123 = por %p121, %p122
      %p125 = scmp.ne.s32.totalorder %s108, %s124
      %p126 = scmp.eq.s32.totalorder %s21, 0
      %p127 = por %p125, %p126
      %s128 = ssub.s32 %s22, %s41
      %s129 = ssub.s32 %s23, %s37
      %s130 = sor.u32 %s128, %s129
      %p131 = scmp.eq.s32.totalorder %s130, 0
      %s133 = sadd.s32 %s132, 1
      %s134 = scalar_select %p131, %s132, %s133
      %p137 = pneg %p131
      %p138 = scmp.eq.s32.totalorder %s15, 2
      %p139 = por %p137, %p138
      %p140 = scmp.ne.s32.totalorder %s132, %s135
      %p141 = scmp.eq.s32.totalorder %s15, 0
      %p142 = por %p140, %p141
      %p143 = scmp.ne.s32.totalorder %s132, %s135
      %p144 = scmp.eq.s32.totalorder %s20, 2
      %p145 = por %p143, %p144
      %p146 = scmp.ne.s32.totalorder %s135, %s136
      %p147 = scmp.eq.s32.totalorder %s20, 0
      %p148 = por %p146, %p147
      %p149 = scmp.ne.s32.totalorder %s135, %s136
      %p150 = scmp.eq.s32.totalorder %s21, 2
      %p151 = por %p149, %p150
      %p153 = scmp.ne.s32.totalorder %s136, %s152
      %p154 = scmp.eq.s32.totalorder %s21, 0
      %p155 = por %p153, %p154
      %p156 = scmp.le.s32.totalorder 1, %s15
      %p157 = scmp.lt.s32.totalorder %s15, 4
      %p158 = pnand %p156, %p157
      %p159 = pneg %p158
      // Predicated region
      $region9: #{tpu_custom_call.1} parent=5 // pred_check
        _
      $region10: #{tpu_custom_call.1} parent=5 // pred_check_branch
        %161 = sbr.rel (%p158) target = $region12
      $region11: #{tpu_custom_call.1} parent=5 // pred_region
        %s162 = ssub.s32 %s15, 1
      $region12: #{tpu_custom_call.1} parent=5 // pred_fallthru
        _
      %p163 = scmp.lt.s32.totalorder %s15, 3
      // Predicated region
      $region13: #{tpu_custom_call.1} parent=5 // pred_check
        %p164 = pneg %p163
      $region14: #{tpu_custom_call.1} parent=5 // pred_check_branch
        %166 = sbr.rel (%p164) target = $region16
      $region15: #{tpu_custom_call.1} parent=5 // pred_region
        // Predicated region
        $region17: #{tpu_custom_call.1} parent=15 // pred_check
          %p167 = pneg %p58
        $region18: #{tpu_custom_call.1} parent=15 // pred_check_branch
          %169 = sbr.rel (%p167) target = $region20
        $region19: #{tpu_custom_call.1} parent=15 // pred_region
          %s170 = sand.u32 %s48, 1
          %s171 = scalar_lea.sflag [#allocation3], %s170
          %s172 = sand.u32 %s48, 1
          %s173 = smul.addr %s172, 4
          %s174 = scalar_lea.vmem [#allocation2], %s173
          %s175 = sadd.s32 %s24, %s23
          %s176 = smul.u32 2, %s175
          %s178 = ssub.s32 64, 64
          %179 = vsyncadd %s171, %s178
          %s180 = smul.addr %s22, 6
          %s181 = sadd.s32 %s176, %s180
          %s182 = smul.addr %s181, 32
          %s183 = scalar_lea.hbm %s0, %s182
          %s185 = sshll.u32 %s174, 4
          %s186 = int_to_ptr.vmem [resolvable:$true] %s185
          %188 = dma.hbm_to_vmem [thread:$0]  %s183, 64, %s186, %s171
        $region20: #{tpu_custom_call.1} parent=15 // pred_fallthru
          _
      $region16: #{tpu_custom_call.1} parent=5 // pred_fallthru
        _
      %p189 = scmp.le.s32.totalorder 1, %s15
      %p190 = scmp.lt.s32.totalorder %s15, 4
      %p191 = pnand %p189, %p190
      %p192 = pneg %p191
      // Predicated region
      $region21: #{tpu_custom_call.1} parent=5 // pred_check
        _
      $region22: #{tpu_custom_call.1} parent=5 // pred_check_branch
        %194 = sbr.rel (%p191) target = $region24
      $region23: #{tpu_custom_call.1} parent=5 // pred_region
        %s195 = ssub.s32 %s15, 1
        %s196 = sand.u32 %s51, 1
        %s197 = scalar_lea.sflag [#allocation3], %s196
        %s198 = sand.u32 %s51, 1
        %s199 = smul.addr %s198, 4
        %s200 = scalar_lea.vmem [#allocation2], %s199
        // Predicated region
        $region25: #{tpu_custom_call.1} parent=23 // pred_check
          %p201 = pneg %p64
        $region26: #{tpu_custom_call.1} parent=23 // pred_check_branch
          %203 = sbr.rel (%p201) target = $region28
        $region27: #{tpu_custom_call.1} parent=23 // pred_region
          %204 = dma.done %s197, 64
        $region28: #{tpu_custom_call.1} parent=23 // pred_fallthru
          _
        %s205 = sand.u32 %s51, 1
        %s206 = scalar_lea.sflag [#allocation3], %s205
        %s207 = sand.u32 %s51, 1
        %s208 = smul.addr %s207, 4
        %s209 = scalar_lea.vmem [#allocation2], %s208
        %p210 = pneg %p64
        %p211 = pneg %p61
        %p212 = pneg %p92
        %p213 = pneg %p89
        %p214 = pneg %p120
        %p215 = pneg %p117
        %p216 = pneg %p148
        %p217 = pneg %p145
        %s218 = sadd.s32 %s27, %s26
        %s219 = smul.u32 2, %s218
        %s220 = smul.u32 2, %s26
        %s221 = smul.u32 2, %s26
        %s222 = smul.u32 2, %s26
        %p223 = scmp.eq.s32.totalorder %s27, 0
        // Predicated region
        $region29: #{tpu_custom_call.1} parent=23 // pred_check
          %p224 = pneg %p223
        $region30: #{tpu_custom_call.1} parent=23 // pred_check_branch
          %226 = sbr.rel (%p224) target = $region32
        $region31: #{tpu_custom_call.1} parent=23 // pred_region
          %v227 = vld [vmem:[%s200] sm:$0xf]
          %228 = vst [vmem:[#allocation5] sm:$0xf] %v227
        $region32: #{tpu_custom_call.1} parent=23 // pred_fallthru
          _
        %p229 = scmp.eq.s32.totalorder %s27, 1
        // Predicated region
        $region33: #{tpu_custom_call.1} parent=23 // pred_check
          %p230 = pneg %p229
        $region34: #{tpu_custom_call.1} parent=23 // pred_check_branch
          %232 = sbr.rel (%p230) target = $region36
        $region35: #{tpu_custom_call.1} parent=23 // pred_region
          %v233 = vld [vmem:[%s200] sm:$0xf]
          %234 = vst [vmem:[#allocation6] sm:$0xf] %v233
        $region36: #{tpu_custom_call.1} parent=23 // pred_fallthru
          _
        %p235 = scmp.eq.s32.totalorder %s27, 2
        // Predicated region
        $region37: #{tpu_custom_call.1} parent=23 // pred_check
          %p236 = pneg %p235
        $region38: #{tpu_custom_call.1} parent=23 // pred_check_branch
          %238 = sbr.rel (%p236) target = $region40
        $region39: #{tpu_custom_call.1} parent=23 // pred_region
          %v239 = vld [vmem:[%s200] sm:$0xf]
          %240 = vst [vmem:[#allocation8] sm:$0xf] %v239
        $region40: #{tpu_custom_call.1} parent=23 // pred_fallthru
          _
        // Predicated region
        $region41: #{tpu_custom_call.1} parent=23 // pred_check
          %p241 = pneg %p89
        $region42: #{tpu_custom_call.1} parent=23 // pred_check_branch
          %243 = sbr.rel (%p241) target = $region44
        $region43: #{tpu_custom_call.1} parent=23 // pred_region
          %s244 = smul.u32 2, %s26
          %s246 = ssub.s32 64, 64
          %247 = vsyncadd [#allocation4], %s246
          %s248 = smul.addr %s25, 2
          %s249 = sadd.s32 %s244, %s248
          %s250 = smul.addr %s249, 32
          %s251 = scalar_lea.hbm %s1, %s250
          %s253 = sshll.u32 [#allocation5], 4
          %s254 = int_to_ptr.vmem [resolvable:$true] %s253
          %256 = dma.vmem_to_hbm [thread:$0]  %s254, 64, %s251, [#allocation4]
        $region44: #{tpu_custom_call.1} parent=23 // pred_fallthru
          _
        // Predicated region
        $region45: #{tpu_custom_call.1} parent=23 // pred_check
          %p257 = pneg %p117
        $region46: #{tpu_custom_call.1} parent=23 // pred_check_branch
          %259 = sbr.rel (%p257) target = $region48
        $region47: #{tpu_custom_call.1} parent=23 // pred_region
          %s260 = smul.u32 2, %s26
          %s262 = ssub.s32 64, 64
          %263 = vsyncadd [#allocation7], %s262
          %s264 = smul.addr %s25, 2
          %s265 = sadd.s32 %s260, %s264
          %s266 = smul.addr %s265, 32
          %s267 = scalar_lea.hbm %s2, %s266
          %s269 = sshll.u32 [#allocation6], 4
          %s270 = int_to_ptr.vmem [resolvable:$true] %s269
          %272 = dma.vmem_to_hbm [thread:$0]  %s270, 64, %s267, [#allocation7]
        $region48: #{tpu_custom_call.1} parent=23 // pred_fallthru
          _
        // Predicated region
        $region49: #{tpu_custom_call.1} parent=23 // pred_check
          %p273 = pneg %p145
        $region50: #{tpu_custom_call.1} parent=23 // pred_check_branch
          %275 = sbr.rel (%p273) target = $region52
        $region51: #{tpu_custom_call.1} parent=23 // pred_region
          %s276 = smul.u32 2, %s26
          %s278 = ssub.s32 64, 64
          %279 = vsyncadd [#allocation7], %s278
          %s280 = smul.addr %s25, 2
          %s281 = sadd.s32 %s276, %s280
          %s282 = smul.addr %s281, 32
          %s283 = scalar_lea.hbm %s3, %s282
          %s285 = sshll.u32 [#allocation8], 4
          %s286 = int_to_ptr.vmem [resolvable:$true] %s285
          %288 = dma.vmem_to_hbm [thread:$0]  %s286, 64, %s283, [#allocation7]
        $region52: #{tpu_custom_call.1} parent=23 // pred_fallthru
          _
        // Predicated region
        $region53: #{tpu_custom_call.1} parent=23 // pred_check
          %p289 = pneg %p89
        $region54: #{tpu_custom_call.1} parent=23 // pred_check_branch
          %291 = sbr.rel (%p289) target = $region56
        $region55: #{tpu_custom_call.1} parent=23 // pred_region
          %292 = dma.done [#allocation4], 64
        $region56: #{tpu_custom_call.1} parent=23 // pred_fallthru
          _
        // Predicated region
        $region57: #{tpu_custom_call.1} parent=23 // pred_check
          %p293 = pneg %p117
        $region58: #{tpu_custom_call.1} parent=23 // pred_check_branch
          %295 = sbr.rel (%p293) target = $region60
        $region59: #{tpu_custom_call.1} parent=23 // pred_region
          %296 = dma.done [#allocation7], 64
        $region60: #{tpu_custom_call.1} parent=23 // pred_fallthru
          _
        // Predicated region
        $region61: #{tpu_custom_call.1} parent=23 // pred_check
          %p297 = pneg %p145
        $region62: #{tpu_custom_call.1} parent=23 // pred_check_branch
          %299 = sbr.rel (%p297) target = $region64
        $region63: #{tpu_custom_call.1} parent=23 // pred_region
          %300 = dma.done [#allocation7], 64
        $region64: #{tpu_custom_call.1} parent=23 // pred_fallthru
          _
      $region24: #{tpu_custom_call.1} parent=5 // pred_fallthru
        _
      %p301 = scmp.le.s32.totalorder 2, %s15
      // Predicated region
      $region65: #{tpu_custom_call.1} parent=5 // pred_check
        %p302 = pneg %p301
      $region66: #{tpu_custom_call.1} parent=5 // pred_check_branch
        %304 = sbr.rel (%p302) target = $region68
      $region67: #{tpu_custom_call.1} parent=5 // pred_region
        %s305 = ssub.s32 %s15, 2
      $region68: #{tpu_custom_call.1} parent=5 // pred_fallthru
        _
    $region6: #{tpu_custom_call.1} parent=1 // loop_footer
      %s19 = sadd.s32 1, %s15
    $region7: #{tpu_custom_call.1} parent=1 // loop_footer_branch
      %14 = sbr.rel target = $region3
    $region8: #{tpu_custom_call.1} parent=1 // loop_exit
      _
    %306 = vsyncpa [#allocation3], 1
    %s307 = scalar_lea.sflag [#allocation3], 1
    %308 = vsyncpa %s307, 1
    %309 = vsyncpa [#allocation4], 1
    %s310 = scalar_lea.sflag [#allocation4], 1
    %311 = vsyncpa %s310, 1
    %312 = vsyncpa [#allocation7], 1

</llo_original>
